<compile_context>
chip_gen: v6e
topology: v6e:2x2x1
jax: 0.10.0
libtpu: 0.0.40
codegen_flags: <defaults>
</compile_context>

<pallas_src>
import functools
import math

import jax
import jax.numpy as jnp
from jax.experimental import pallas as pl
from jax.experimental.pallas import tpu as pltpu

# ----------------------------- config (small BERT) -----------------------------
VOCAB = 128
HIDDEN = 768          # must stay 768 so proj_text Linear(768, 512) is exact
HEADS = 12
HEAD_DIM = HIDDEN // HEADS
LAYERS = 2
INTERMEDIATE = 3072
MAX_POS = 32
PROJ_OUT = 512
LN_EPS = 1e-12

ACT_DTYPE = jnp.bfloat16   # activation / matmul dtype (f32 accumulation)


# ----------------------------- in-kernel helpers -------------------------------
def _ln_f32(x, g, b):
    """LayerNorm over the last axis, f32 statistics. x:[M,N], g/b:[1,N]."""
    mean = jnp.mean(x, axis=-1, keepdims=True)
    var = jnp.mean((x - mean) ** 2, axis=-1, keepdims=True)
    return (x - mean) * jax.lax.rsqrt(var + LN_EPS) * g + b


def _qdot(x, w_ref, s_ref, *, kt=768, nt=768):
    """x @ dequant(w) with int8 weights and per-column f32 scales.

    x      : [M, K] bf16 value
    w_ref  : [K, N] int8 VMEM ref
    s_ref  : [1, N] f32  VMEM ref
    Dequantizes in (kt, nt) tiles so the bf16 temporaries stay ~1 MiB."""
    K, N = w_ref.shape
    parts = []
    for j in range(0, N, nt):
        nw = min(nt, N - j)
        sc = s_ref[:, j:j + nw]                                   # [1, nw] f32
        acc = None
        for k0 in range(0, K, kt):
            kw = min(kt, K - k0)
            w = (w_ref[k0:k0 + kw, j:j + nw].astype(jnp.float32) * sc).astype(ACT_DTYPE)
            part = jnp.dot(x[:, k0:k0 + kw], w, preferred_element_type=jnp.float32)
            acc = part if acc is None else acc + part
        parts.append(acc)
    return parts[0] if len(parts) == 1 else jnp.concatenate(parts, axis=-1)


# ----------------------------- Pallas kernels ----------------------------------
def _emb_ln_kernel(tok_ref, pos_ref, g_ref, b_ref, o_ref):
    # Fused: word-rows + (position + token-type) + LayerNorm, bf16 out.
    x = tok_ref[...] + pos_ref[...][None, :, :]                   # [B, S, H] f32
    mean = jnp.mean(x, axis=-1, keepdims=True)
    var = jnp.mean((x - mean) ** 2, axis=-1, keepdims=True)
    y = (x - mean) * jax.lax.rsqrt(var + LN_EPS)
    o_ref[...] = (y * g_ref[...] + b_ref[...]).astype(o_ref.dtype)


def emb_layernorm(tok, pos_type, gamma, beta):
    B, S, H = tok.shape
    return pl.pallas_call(
        _emb_ln_kernel,
        out_shape=jax.ShapeDtypeStruct((B, S, H), ACT_DTYPE),
    )(tok, pos_type, gamma.reshape(1, 1, H), beta.reshape(1, 1, H))


def _encoder_stack_kernel(
        mask_ref, h0_ref,
        wqkv_ref, sqkv_ref, bqkv_ref,
        wo_ref, so_ref, bo_ref, ln1g_ref, ln1b_ref,
        w1_ref, s1_ref, b1_ref,
        w2_ref, s2_ref, b2_ref, ln2g_ref, ln2b_ref,
        wp_ref, bp_ref,
        out_ref,
        h_scr, qkv_scr, ctx_scr,
        *, batch, seq, heads, head_dim):
    layer = pl.program_id(0)

    @pl.when(layer == 0)
    def _init():
        h_scr[...] = h0_ref[...]

    h_b = h_scr[...]                                              # [M, H] bf16
    h_f = h_b.astype(jnp.float32)

    # ---- fused QKV projection (int8 weights dequantized in-kernel) ------------
    qkv = _qdot(h_b, wqkv_ref, sqkv_ref) + bqkv_ref[...]          # [M, 3H] f32
    qkv_scr[...] = qkv.astype(ACT_DTYPE)

    # ---- all heads in-kernel: no HBM round-trip, no XLA head transposes -------
    scale = 1.0 / math.sqrt(head_dim)
    for b in range(batch):
        mrow = mask_ref[pl.ds(b, 1), :]                           # [1, S] additive
        r0 = b * seq
        for hh in range(heads):
            c0 = hh * head_dim
            q = qkv_scr[pl.ds(r0, seq), pl.ds(c0, head_dim)]                 # [S, D]
            k = qkv_scr[pl.ds(r0, seq), pl.ds(HIDDEN + c0, head_dim)]
            v = qkv_scr[pl.ds(r0, seq), pl.ds(2 * HIDDEN + c0, head_dim)]
            s = jax.lax.dot_general(q, k, (((1,), (1,)), ((), ())),
                                    preferred_element_type=jnp.float32) * scale
            s = s + mrow                                          # mask keys
            s = s - jnp.max(s, axis=-1, keepdims=True)
            p = jnp.exp(s)
            p = p / jnp.sum(p, axis=-1, keepdims=True)            # exact softmax
            ctx = jnp.dot(p.astype(ACT_DTYPE), v, preferred_element_type=jnp.float32)
            ctx_scr[pl.ds(r0, seq), pl.ds(c0, head_dim)] = ctx.astype(ACT_DTYPE)

    # ---- attention output proj + residual + LayerNorm (fused epilogue) --------
    attn = _qdot(ctx_scr[...], wo_ref, so_ref) + bo_ref[...] + h_f
    h1 = _ln_f32(attn, ln1g_ref[...], ln1b_ref[...])              # [M, H] f32
    h1_b = h1.astype(ACT_DTYPE)

    # ---- FFN: gelu(h1 @ w1 + b1) @ w2 + b2 + residual, LayerNorm --------------
    inter = _qdot(h1_b, w1_ref, s1_ref) + b1_ref[...]             # [M, 4H] f32
    inter_b = jax.nn.gelu(inter, approximate=False).astype(ACT_DTYPE)
    ffn = _qdot(inter_b, w2_ref, s2_ref) + b2_ref[...] + h1
    h2 = _ln_f32(ffn, ln2g_ref[...], ln2b_ref[...])               # [M, H] f32

    h_scr[...] = h2.astype(ACT_DTYPE)                             # carry to next layer

    # ---- last layer: [CLS] rows -> proj_text(768 -> 512), still in-kernel -----
    @pl.when(layer == pl.num_programs(0) - 1)
    def _final():
        wp = wp_ref[...]                                          # [H, 512] bf16
        bp = bp_ref[...]                                          # [1, 512] f32
        for b in range(batch):
            cls = h2[b * seq:b * seq + 1, :].astype(ACT_DTYPE)    # [1, H] CLS token
            out_ref[pl.ds(b, 1), :] = (
                jnp.dot(cls, wp, preferred_element_type=jnp.float32) + bp)


def encoder_stack(params, h0, mask_add):
    """Whole 2-layer encoder + CLS projection in ONE pallas_call (grid over layers)."""
    M, H = h0.shape
    B, S = mask_add.shape
    L = params["wqkv_q"].shape[0]
    I = params["w1_q"].shape[2]
    H3 = 3 * H

    def const(shape):
        return pl.BlockSpec(shape, lambda l: (0,) * len(shape))

    def per_layer(shape):
        return pl.BlockSpec((None,) + shape, lambda l: (l,) + (0,) * len(shape))

    kern = functools.partial(_encoder_stack_kernel,
                             batch=B, seq=S, heads=HEADS, head_dim=HEAD_DIM)

    return pl.pallas_call(
        kern,
        out_shape=jax.ShapeDtypeStruct((B, PROJ_OUT), jnp.float32),
        grid=(L,),
        in_specs=[
            const((B, S)),                                        # additive mask
            const((M, H)),                                        # initial hidden
            per_layer((H, H3)), per_layer((1, H3)), per_layer((1, H3)),   # wqkv/s/b
            per_layer((H, H)), per_layer((1, H)), per_layer((1, H)),      # wo/s/b
            per_layer((1, H)), per_layer((1, H)),                          # ln1 g/b
            per_layer((H, I)), per_layer((1, I)), per_layer((1, I)),       # w1/s/b
            per_layer((I, H)), per_layer((1, H)), per_layer((1, H)),       # w2/s/b
            per_layer((1, H)), per_layer((1, H)),                          # ln2 g/b
            const((H, PROJ_OUT)),                                  # proj_text W
            const((1, PROJ_OUT)),                                  # proj_text b
        ],
        out_specs=pl.BlockSpec((B, PROJ_OUT), lambda l: (0, 0)),
        scratch_shapes=[
            pltpu.VMEM((M, H), ACT_DTYPE),                         # hidden carry
            pltpu.VMEM((M, H3), ACT_DTYPE),                        # qkv
            pltpu.VMEM((M, H), ACT_DTYPE),                         # ctx
        ],
        compiler_params=pltpu.CompilerParams(
            dimension_semantics=("arbitrary",),        # layers are sequential
            vmem_limit_bytes=48 * 1024 * 1024,          # fits v7x (64 MiB physical)
        ),
    )(mask_add, h0,
      params["wqkv_q"], params["sqkv"], params["bqkv"],
      params["wo_q"], params["so"], params["bo"],
      params["ln1_g"], params["ln1_b"],
      params["w1_q"], params["s1"], params["b1"],
      params["w2_q"], params["s2"], params["b2"],
      params["ln2_g"], params["ln2_b"],
      params["proj_w"], params["proj_b"])


# ----------------------------- parameter init ----------------------------------
# TODO(synk): the real module loads pretrained HF BERT weights + a tokenizer;
# there is no Pallas equivalent for checkpoint I/O, so deterministic random
# weights with the same architecture/shapes are used instead.
def _quantize_cols(w):
    """Per-output-column symmetric int8 quantization: w ~= q * scale."""
    amax = jnp.max(jnp.abs(w), axis=0, keepdims=True)              # [1, N]
    scale = jnp.maximum(amax, 1e-8) / 127.0
    q = jnp.clip(jnp.round(w / scale), -127, 127).astype(jnp.int8)
    return q, scale.astype(jnp.float32)


def init_params(key):
    def nrm(k, shape):
        return jax.random.normal(k, shape, jnp.float32) * 0.02

    keys = jax.random.split(key, 4 + LAYERS)
    params = {
        "word_emb": nrm(keys[0], (VOCAB, HIDDEN)),
        "pos_emb": nrm(keys[1], (MAX_POS, HIDDEN)),
        "type_emb": nrm(keys[2], (2, HIDDEN)),
        "emb_ln_g": jnp.ones((HIDDEN,), jnp.float32),
        "emb_ln_b": jnp.zeros((HIDDEN,), jnp.float32),
        "proj_w": nrm(keys[3], (HIDDEN, PROJ_OUT)).astype(ACT_DTYPE),
        "proj_b": jnp.zeros((1, PROJ_OUT), jnp.float32),
    }
    wqkv_q, sqkv, wo_q, so, w1_q, s1, w2_q, s2 = ([] for _ in range(8))
    for li in range(LAYERS):
        lk = jax.random.split(keys[4 + li], 4)
        q, s = _quantize_cols(nrm(lk[0], (HIDDEN, 3 * HIDDEN))); wqkv_q.append(q); sqkv.append(s)
        q, s = _quantize_cols(nrm(lk[1], (HIDDEN, HIDDEN)));     wo_q.append(q);  so.append(s)
        q, s = _quantize_cols(nrm(lk[2], (HIDDEN, INTERMEDIATE))); w1_q.append(q); s1.append(s)
        q, s = _quantize_cols(nrm(lk[3], (INTERMEDIATE, HIDDEN))); w2_q.append(q); s2.append(s)
    L = LAYERS
    params.update({
        "wqkv_q": jnp.stack(wqkv_q), "sqkv": jnp.stack(sqkv),
        "bqkv": jnp.zeros((L, 1, 3 * HIDDEN), jnp.float32),
        "wo_q": jnp.stack(wo_q), "so": jnp.stack(so),
        "bo": jnp.zeros((L, 1, HIDDEN), jnp.float32),
        "ln1_g": jnp.ones((L, 1, HIDDEN), jnp.float32),
        "ln1_b": jnp.zeros((L, 1, HIDDEN), jnp.float32),
        "w1_q": jnp.stack(w1_q), "s1": jnp.stack(s1),
        "b1": jnp.zeros((L, 1, INTERMEDIATE), jnp.float32),
        "w2_q": jnp.stack(w2_q), "s2": jnp.stack(s2),
        "b2": jnp.zeros((L, 1, HIDDEN), jnp.float32),
        "ln2_g": jnp.ones((L, 1, HIDDEN), jnp.float32),
        "ln2_b": jnp.zeros((L, 1, HIDDEN), jnp.float32),
    })
    return params


# ----------------------------- forward pass ------------------------------------
def text_encoder_forward(params, reports, attention_mask):
    B, S = reports.shape
    M = B * S

    # TODO(synk): token-id embedding gather stays in XLA (no clean Pallas gather
    # for [B, S] integer ids); the adds + LayerNorm are fused in a Pallas kernel.
    tok = params["word_emb"][reports]                              # [B, S, H] f32
    pos_type = params["pos_emb"][:S] + params["type_emb"][0][None, :]   # [S, H]
    h0 = emb_layernorm(tok, pos_type, params["emb_ln_g"], params["emb_ln_b"])
    h0 = h0.reshape(M, HIDDEN)                                     # free (leading-dim merge)

    # additive attention mask over keys (standard BERT extended mask; only
    # token_type_ids == 0 are modeled, matching the single-segment use case).
    mask_add = (1.0 - attention_mask.astype(jnp.float32)) * -1e9   # [B, S]

    return encoder_stack(params, h0, mask_add)                     # [B, 512] f32


# ----------------------------- main ---------------------------------------------
if __name__ == "__main__":
    key = jax.random.PRNGKey(0)
    k_param, k_ids = jax.random.split(key)

    B, S = 2, 8
    params = init_params(k_param)
    reports = jax.random.randint(k_ids, (B, S), 0, VOCAB, dtype=jnp.int32)
    attention_mask = jnp.array([[1, 1, 1, 1, 1, 1, 1, 1],
                                [1, 1, 1, 1, 1, 1, 0, 0]], dtype=jnp.int32)

    out = text_encoder_forward(params, reports, attention_mask)
    out = jax.block_until_ready(out)
    assert out.shape == (B, PROJ_OUT) and out.dtype == jnp.float32
    assert bool(jnp.all(jnp.isfinite(out)))
    print("KERNEL_OK")
</pallas_src>

<mosaic_0001>
module attributes {stable_mosaic.version = 11 : i64} {
  func.func @_emb_ln_kernel(%arg0: memref<2x8x768xf32, #tpu.memory_space<vmem>>, %arg1: memref<8x768xf32, #tpu.memory_space<vmem>>, %arg2: memref<1x1x768xf32, #tpu.memory_space<vmem>>, %arg3: memref<1x1x768xf32, #tpu.memory_space<vmem>>, %arg4: memref<2x8x768xbf16, #tpu.memory_space<vmem>>) attributes {dimension_semantics = [], scalar_prefetch = 0 : i64, scratch_operands = 0 : i64, tpu.core_type = #tpu.core_type<tc>} {
    %c0 = arith.constant 0 : index
    %c0_0 = arith.constant 0 : index
    %c0_1 = arith.constant 0 : index
    %0 = vector.load %arg0[%c0, %c0_0, %c0_1] : memref<2x8x768xf32, #tpu.memory_space<vmem>>, vector<2x8x768xf32>
    %c0_2 = arith.constant 0 : index
    %c0_3 = arith.constant 0 : index
    %1 = vector.load %arg1[%c0_2, %c0_3] : memref<8x768xf32, #tpu.memory_space<vmem>>, vector<8x768xf32>
    %2 = vector.shape_cast %1 : vector<8x768xf32> to vector<1x8x768xf32>
    %3 = vector.broadcast %2 : vector<1x8x768xf32> to vector<2x8x768xf32>
    %4 = arith.addf %0, %3 : vector<2x8x768xf32>
    %cst = arith.constant dense<0.000000e+00> : vector<2x8xf32>
    %5 = vector.multi_reduction <add>, %4, %cst [2] : vector<2x8x768xf32> to vector<2x8xf32>
    %6 = vector.shape_cast %5 : vector<2x8xf32> to vector<2x8x1xf32>
    %cst_4 = arith.constant 7.680000e+02 : f32
    %7 = vector.broadcast %cst_4 : f32 to vector<2x8x1xf32>
    %8 = arith.divf %6, %7 : vector<2x8x1xf32>
    %9 = vector.broadcast %8 : vector<2x8x1xf32> to vector<2x8x768xf32>
    %10 = arith.subf %4, %9 : vector<2x8x768xf32>
    %11 = arith.mulf %10, %10 : vector<2x8x768xf32>
    %cst_5 = arith.constant dense<0.000000e+00> : vector<2x8xf32>
    %12 = vector.multi_reduction <add>, %11, %cst_5 [2] : vector<2x8x768xf32> to vector<2x8xf32>
    %13 = vector.shape_cast %12 : vector<2x8xf32> to vector<2x8x1xf32>
    %cst_6 = arith.constant 7.680000e+02 : f32
    %14 = vector.broadcast %cst_6 : f32 to vector<2x8x1xf32>
    %15 = arith.divf %13, %14 : vector<2x8x1xf32>
    %16 = vector.broadcast %8 : vector<2x8x1xf32> to vector<2x8x768xf32>
    %17 = arith.subf %4, %16 : vector<2x8x768xf32>
    %cst_7 = arith.constant 9.99999996E-13 : f32
    %18 = vector.broadcast %cst_7 : f32 to vector<2x8x1xf32>
    %19 = arith.addf %15, %18 : vector<2x8x1xf32>
    %20 = math.rsqrt %19 : vector<2x8x1xf32>
    %21 = vector.broadcast %20 : vector<2x8x1xf32> to vector<2x8x768xf32>
    %22 = arith.mulf %17, %21 : vector<2x8x768xf32>
    %c0_8 = arith.constant 0 : index
    %c0_9 = arith.constant 0 : index
    %c0_10 = arith.constant 0 : index
    %23 = vector.load %arg2[%c0_8, %c0_9, %c0_10] : memref<1x1x768xf32, #tpu.memory_space<vmem>>, vector<1x1x768xf32>
    %24 = vector.broadcast %23 : vector<1x1x768xf32> to vector<2x8x768xf32>
    %25 = arith.mulf %22, %24 : vector<2x8x768xf32>
    %c0_11 = arith.constant 0 : index
    %c0_12 = arith.constant 0 : index
    %c0_13 = arith.constant 0 : index
    %26 = vector.load %arg3[%c0_11, %c0_12, %c0_13] : memref<1x1x768xf32, #tpu.memory_space<vmem>>, vector<1x1x768xf32>
    %27 = vector.broadcast %26 : vector<1x1x768xf32> to vector<2x8x768xf32>
    %28 = arith.addf %25, %27 : vector<2x8x768xf32>
    %29 = arith.truncf %28 : vector<2x8x768xf32> to vector<2x8x768xbf16>
    %c0_14 = arith.constant 0 : index
    %c0_15 = arith.constant 0 : index
    %c0_16 = arith.constant 0 : index
    %30 = vector.load %arg4[%c0_14, %c0_15, %c0_16] : memref<2x8x768xbf16, #tpu.memory_space<vmem>>, vector<2x8x768xbf16>
    tpu.vector_store %arg4[%c0_14, %c0_15, %c0_16], %29 {strides = array<i32>} : memref<2x8x768xbf16, #tpu.memory_space<vmem>>, vector<2x8x768xbf16>,
    return
  }
}

</mosaic_0001>

<llo_original>
// kernel: tpu_custom_call.1
$region0: #{tpu_custom_call.1}
  #allocation0 [shape = 'u32[]', space=smem, size = 0x4, offset = 0x4, fixed_abs, tag = 'smem constant byte address 0x4 - core index']
  #allocation1 [shape = 'u32[144,128]{1,0:T(1,128)}', space=vmem, size = 0x12000, scoped, tag = 'internal scratch']
  %s0 = inlined_call_operand.hbm [shape: f32[2,8,768], index: 0, kind: input, shape index: {}]
  %s1 = inlined_call_operand.hbm [shape: f32[8,768], index: 1, kind: input, shape index: {}]
  %s2 = inlined_call_operand.hbm [shape: f32[1,1,768], index: 2, kind: input, shape index: {}]
  %s3 = inlined_call_operand.hbm [shape: f32[1,1,768], index: 3, kind: input, shape index: {}]
  %s4 = inlined_call_operand.hbm [shape: bf16[2,8,768], index: 4, kind: output, shape index: {}]
  %s5 = sld [smem:[#allocation0]]
  $region42: #{tpu_custom_call.1} parent=0
    _
  %s7 = ssub.s32 1, %s5
  %s8 = scalar_select 0, %s7, %s5
  $region1: #{tpu_custom_call.1} parent=0
    #allocation2 [shape = 'u8[49152]{0}', space=vmem, size = 0xc000, scoped, tag = 'input window, operand 0, single buffered']
    #allocation3 [shape = 's32[1]{0}', space=sflag, size = 0x4, scoped, tag = 'scoped memory for tpu_custom_call.1']
    #allocation4 [shape = 's32[1]{0}', space=sflag, size = 0x4, scoped, tag = 'scoped memory for tpu_custom_call.1']
    #allocation5 [shape = 'u8[24576]{0}', space=vmem, size = 0x6000, scoped, tag = 'input window, operand 1, single buffered']
    #allocation6 [shape = 's32[1]{0}', space=sflag, size = 0x4, scoped, tag = 'scoped memory for tpu_custom_call.1']
    #allocation7 [shape = 'u8[3072]{0}', space=vmem, size = 0xc00, scoped, tag = 'input window, operand 2, single buffered']
    #allocation8 [shape = 'u8[3072]{0}', space=vmem, size = 0xc00, scoped, tag = 'input window, operand 3, single buffered']
    #allocation9 [shape = 's32[1]{0}', space=sflag, size = 0x4, scoped, tag = 'scoped memory for tpu_custom_call.1']
    #allocation10 [shape = 'u8[24576]{0}', space=vmem, size = 0x6000, scoped, tag = 'output window, operand 0, single buffered']
    %9 = vsyncpa [#allocation3], 0
    %10 = vsyncpa [#allocation6], 0
    %11 = vsyncpa [#allocation9], 0
    %12 = vsyncpa [#allocation4], 0
    // Predicated region
    $region2: #{tpu_custom_call.1} parent=1 // pred_check
      _
    $region3: #{tpu_custom_call.1} parent=1 // pred_check_branch
      %14 = sbr.rel (0) target = $region5
    $region4: #{tpu_custom_call.1} parent=1 // pred_region
      %s16 = ssub.s32 1536, 1536
      %17 = vsyncadd [#allocation3], %s16
      %s18 = sshll.u32 [#allocation2], 4
      %s19 = int_to_ptr.vmem [resolvable:$true] %s18
      %24 = dma.hbm_to_vmem [thread:$0]  %s0, 1536, %s19, [#allocation3], 768, 768, 48
    $region5: #{tpu_custom_call.1} parent=1 // pred_fallthru
      _
    // Predicated region
    $region6: #{tpu_custom_call.1} parent=1 // pred_check
      _
    $region7: #{tpu_custom_call.1} parent=1 // pred_check_branch
      %26 = sbr.rel (0) target = $region9
    $region8: #{tpu_custom_call.1} parent=1 // pred_region
      %s28 = ssub.s32 768, 768
      %29 = vsyncadd [#allocation6], %s28
      %s31 = sshll.u32 [#allocation5], 4
      %s32 = int_to_ptr.vmem [resolvable:$true] %s31
      %34 = dma.hbm_to_vmem [thread:$0]  %s1, 768, %s32, [#allocation6]
    $region9: #{tpu_custom_call.1} parent=1 // pred_fallthru
      _
    // Predicated region
    $region10: #{tpu_custom_call.1} parent=1 // pred_check
      _
    $region11: #{tpu_custom_call.1} parent=1 // pred_check_branch
      %36 = sbr.rel (0) target = $region13
    $region12: #{tpu_custom_call.1} parent=1 // pred_region
      %s38 = ssub.s32 96, 96
      %39 = vsyncadd [#allocation6], %s38
      %s41 = sshll.u32 [#allocation7], 4
      %s42 = int_to_ptr.vmem [resolvable:$true] %s41
      %44 = dma.hbm_to_vmem [thread:$0]  %s2, 96, %s42, [#allocation6]
    $region13: #{tpu_custom_call.1} parent=1 // pred_fallthru
      _
    // Predicated region
    $region14: #{tpu_custom_call.1} parent=1 // pred_check
      _
    $region15: #{tpu_custom_call.1} parent=1 // pred_check_branch
      %46 = sbr.rel (0) target = $region17
    $region16: #{tpu_custom_call.1} parent=1 // pred_region
      %s48 = ssub.s32 96, 96
      %49 = vsyncadd [#allocation9], %s48
      %s51 = sshll.u32 [#allocation8], 4
      %s52 = int_to_ptr.vmem [resolvable:$true] %s51
      %54 = dma.hbm_to_vmem [thread:$0]  %s3, 96, %s52, [#allocation9]
    $region17: #{tpu_custom_call.1} parent=1 // pred_fallthru
      _
    // Predicated region
    $region18: #{tpu_custom_call.1} parent=1 // pred_check
      _
    $region19: #{tpu_custom_call.1} parent=1 // pred_check_branch
      %56 = sbr.rel (0) target = $region21
    $region20: #{tpu_custom_call.1} parent=1 // pred_region
      %57 = dma.done [#allocation3], 1536
    $region21: #{tpu_custom_call.1} parent=1 // pred_fallthru
      _
    // Predicated region
    $region22: #{tpu_custom_call.1} parent=1 // pred_check
      _
    $region23: #{tpu_custom_call.1} parent=1 // pred_check_branch
      %59 = sbr.rel (0) target = $region25
    $region24: #{tpu_custom_call.1} parent=1 // pred_region
      %60 = dma.done [#allocation6], 768
    $region25: #{tpu_custom_call.1} parent=1 // pred_fallthru
      _
    // Predicated region
    $region26: #{tpu_custom_call.1} parent=1 // pred_check
      _
    $region27: #{tpu_custom_call.1} parent=1 // pred_check_branch
      %62 = sbr.rel (0) target = $region29
    $region28: #{tpu_custom_call.1} parent=1 // pred_region
      %63 = dma.done [#allocation6], 96
    $region29: #{tpu_custom_call.1} parent=1 // pred_fallthru
      _
    // Predicated region
    $region30: #{tpu_custom_call.1} parent=1 // pred_check
      _
    $region31: #{tpu_custom_call.1} parent=1 // pred_check_branch
      %65 = sbr.rel (0) target = $region33
    $region32: #{tpu_custom_call.1} parent=1 // pred_region
      %66 = dma.done [#allocation9], 96
    $region33: #{tpu_custom_call.1} parent=1 // pred_fallthru
      _
    %v67 = vld [vmem:[#allocation2] sm:$0xff]
    %v68 = vld [vmem:[#allocation2 + $0x8] sm:$0xff]
    %v69 = vld [vmem:[#allocation2 + $0x10] sm:$0xff]
    %v70 = vld [vmem:[#allocation2 + $0x18] sm:$0xff]
    %v71 = vld [vmem:[#allocation2 + $0x20] sm:$0xff]
    %v72 = vld [vmem:[#allocation2 + $0x28] sm:$0xff]
    %v73 = vld [vmem:[#allocation2 + $0x30] sm:$0xff]
    %v74 = vld [vmem:[#allocation2 + $0x38] sm:$0xff]
    %v75 = vld [vmem:[#allocation2 + $0x40] sm:$0xff]
    %v76 = vld [vmem:[#allocation2 + $0x48] sm:$0xff]
    %v77 = vld [vmem:[#allocation2 + $0x50] sm:$0xff]
    %v78 = vld [vmem:[#allocation2 + $0x58] sm:$0xff]
    %v79 = vld [vmem:[#allocation5] sm:$0xff]
    %v80 = vld [vmem:[#allocation5 + $0x8] sm:$0xff]
    %v81 = vld [vmem:[#allocation5 + $0x10] sm:$0xff]
    %v82 = vld [vmem:[#allocation5 + $0x18] sm:$0xff]
    %v83 = vld [vmem:[#allocation5 + $0x20] sm:$0xff]
    %v84 = vld [vmem:[#allocation5 + $0x28] sm:$0xff]
    %v85 = vadd.f32 %v67, %v79
    %v86 = vadd.f32 %v68, %v80
    %v87 = vadd.f32 %v69, %v81
    %v88 = vadd.f32 %v70, %v82
    %v89 = vadd.f32 %v71, %v83
    %v90 = vadd.f32 %v72, %v84
    %v91 = vadd.f32 %v73, %v79
    %v92 = vadd.f32 %v74, %v80
    %v93 = vadd.f32 %v75, %v81
    %v94 = vadd.f32 %v76, %v82
    %v95 = vadd.f32 %v77, %v83
    %v96 = vadd.f32 %v78, %v84
    %v97 = vadd.f32 %v85, %v86
    %v98 = vadd.f32 %v97, %v87
    %v99 = vadd.f32 %v98, %v88
    %v100 = vadd.f32 %v99, %v89
    %v101 = vadd.f32 %v100, %v90
    %102 = vadd.xlane.f32.xlu0 %v101
    %v103 = vpop.xlane.xlu0 %102
    %v104 = vadd.f32 %v91, %v92
    %v105 = vadd.f32 %v104, %v93
    %v106 = vadd.f32 %v105, %v94
    %v107 = vadd.f32 %v106, %v95
    %v108 = vadd.f32 %v107, %v96
    %109 = vadd.xlane.f32.xlu0 %v108
    %v110 = vpop.xlane.xlu0 %109
    %v111 = vrcp.pop 768.0
    %v112 = vmul.f32 %v103, %v111
    %v113 = vmul.f32 %v110, %v111
    %v114 = vsub.f32 %v85, %v112
    %v115 = vsub.f32 %v86, %v112
    %v116 = vsub.f32 %v87, %v112
    %v117 = vsub.f32 %v88, %v112
    %v118 = vsub.f32 %v89, %v112
    %v119 = vsub.f32 %v90, %v112
    %v120 = vsub.f32 %v91, %v113
    %v121 = vsub.f32 %v92, %v113
    %v122 = vsub.f32 %v93, %v113
    %v123 = vsub.f32 %v94, %v113
    %v124 = vsub.f32 %v95, %v113
    %v125 = vsub.f32 %v96, %v113
    %v126 = vmul.f32 %v114, %v114
    %v127 = vmul.f32 %v115, %v115
    %v128 = vmul.f32 %v116, %v116
    %v129 = vmul.f32 %v117, %v117
    %v130 = vmul.f32 %v118, %v118
    %v131 = vmul.f32 %v119, %v119
    %v132 = vmul.f32 %v120, %v120
    %v133 = vmul.f32 %v121, %v121
    %v134 = vmul.f32 %v122, %v122
    %v135 = vmul.f32 %v123, %v123
    %v136 = vmul.f32 %v124, %v124
    %v137 = vmul.f32 %v125, %v125
    %v138 = vadd.f32 %v126, %v127
    %v139 = vadd.f32 %v138, %v128
    %v140 = vadd.f32 %v139, %v129
    %v141 = vadd.f32 %v140, %v130
    %v142 = vadd.f32 %v141, %v131
    %143 = vadd.xlane.f32.xlu0 %v142
    %v144 = vpop.xlane.xlu0 %143
    %v145 = vadd.f32 %v132, %v133
    %v146 = vadd.f32 %v145, %v134
    %v147 = vadd.f32 %v146, %v135
    %v148 = vadd.f32 %v147, %v136
    %v149 = vadd.f32 %v148, %v137
    %150 = vadd.xlane.f32.xlu0 %v149
    %v151 = vpop.xlane.xlu0 %150
    %v152 = vmul.f32 %v144, %v111
    %v153 = vmul.f32 %v151, %v111
    %v154 = vadd.f32 %v152, 1e-12
    %v155 = vadd.f32 %v153, 1e-12
    %v156 = vrsqrt.pop %v154
    %v157 = vrsqrt.pop %v155
    %v158 = vmul.f32 %v114, %v156
    %v159 = vmul.f32 %v115, %v156
    %v160 = vmul.f32 %v116, %v156
    %v161 = vmul.f32 %v117, %v156
    %v162 = vmul.f32 %v118, %v156
    %v163 = vmul.f32 %v119, %v156
    %v164 = vmul.f32 %v120, %v157
    %v165 = vmul.f32 %v121, %v157
    %v166 = vmul.f32 %v122, %v157
    %v167 = vmul.f32 %v123, %v157
    %v168 = vmul.f32 %v124, %v157
    %v169 = vmul.f32 %v125, %v157
    %v170 = vld [vmem:[#allocation7] sm:$0x3f]
    %v172 = vlaneseq
    %v173 = vshrl.u32 %v172, 7
    %v174 = vsub.s32 0, %v173
    %v175 = vrot.slane %v170, %v174
    %v176 = vlaneseq
    %v177 = vshrl.u32 %v176, 7
    %v178 = vsub.s32 1, %v177
    %v179 = vrot.slane %v170, %v178
    %v180 = vlaneseq
    %v181 = vshrl.u32 %v180, 7
    %v182 = vsub.s32 2, %v181
    %v183 = vrot.slane %v170, %v182
    %v184 = vlaneseq
    %v185 = vshrl.u32 %v184, 7
    %v186 = vsub.s32 3, %v185
    %v187 = vrot.slane %v170, %v186
    %v188 = vlaneseq
    %v189 = vshrl.u32 %v188, 7
    %v190 = vsub.s32 4, %v189
    %v191 = vrot.slane %v170, %v190
    %v192 = vlaneseq
    %v193 = vshrl.u32 %v192, 7
    %v194 = vsub.s32 5, %v193
    %v195 = vrot.slane %v170, %v194
    %v202 = vmul.f32 %v158, %v175
    %v203 = vmul.f32 %v159, %v179
    %v204 = vmul.f32 %v160, %v183
    %v205 = vmul.f32 %v161, %v187
    %v206 = vmul.f32 %v162, %v191
    %v207 = vmul.f32 %v163, %v195
    %v208 = vmul.f32 %v164, %v175
    %v209 = vmul.f32 %v165, %v179
    %v210 = vmul.f32 %v166, %v183
    %v211 = vmul.f32 %v167, %v187
    %v212 = vmul.f32 %v168, %v191
    %v213 = vmul.f32 %v169, %v195
    %v214 = vld [vmem:[#allocation8] sm:$0x3f]
    %v216 = vlaneseq
    %v217 = vshrl.u32 %v216, 7
    %v218 = vsub.s32 0, %v217
    %v219 = vrot.slane %v214, %v218
    %v220 = vlaneseq
    %v221 = vshrl.u32 %v220, 7
    %v222 = vsub.s32 1, %v221
    %v223 = vrot.slane %v214, %v222
    %v224 = vlaneseq
    %v225 = vshrl.u32 %v224, 7
    %v226 = vsub.s32 2, %v225
    %v227 = vrot.slane %v214, %v226
    %v228 = vlaneseq
    %v229 = vshrl.u32 %v228, 7
    %v230 = vsub.s32 3, %v229
    %v231 = vrot.slane %v214, %v230
    %v232 = vlaneseq
    %v233 = vshrl.u32 %v232, 7
    %v234 = vsub.s32 4, %v233
    %v235 = vrot.slane %v214, %v234
    %v236 = vlaneseq
    %v237 = vshrl.u32 %v236, 7
    %v238 = vsub.s32 5, %v237
    %v239 = vrot.slane %v214, %v238
    %v246 = vadd.f32 %v202, %v219
    %v247 = vadd.f32 %v203, %v223
    %v248 = vadd.f32 %v204, %v227
    %v249 = vadd.f32 %v205, %v231
    %v250 = vadd.f32 %v206, %v235
    %v251 = vadd.f32 %v207, %v239
    %v252 = vadd.f32 %v208, %v219
    %v253 = vadd.f32 %v209, %v223
    %v254 = vadd.f32 %v210, %v227
    %v255 = vadd.f32 %v211, %v231
    %v256 = vadd.f32 %v212, %v235
    %v257 = vadd.f32 %v213, %v239
    %v258 = vpack.c.bf16 %v246, %v246
    %v259 = vpack.c.bf16 %v247, %v247
    %v260 = vpack.c.bf16 %v248, %v248
    %v261 = vpack.c.bf16 %v249, %v249
    %v262 = vpack.c.bf16 %v250, %v250
    %v263 = vpack.c.bf16 %v251, %v251
    %v264 = vpack.c.bf16 %v252, %v252
    %v265 = vpack.c.bf16 %v253, %v253
    %v266 = vpack.c.bf16 %v254, %v254
    %v267 = vpack.c.bf16 %v255, %v255
    %v268 = vpack.c.bf16 %v256, %v256
    %v269 = vpack.c.bf16 %v257, %v257
    %v282 = vunpack.c.l.b16 %v258
    %v283 = vunpack.c.l.b16 %v259
    %v284 = vunpack.c.l.b16 %v260
    %v285 = vunpack.c.l.b16 %v261
    %v286 = vunpack.c.l.b16 %v262
    %v287 = vunpack.c.l.b16 %v263
    %v288 = vunpack.c.l.b16 %v264
    %v289 = vunpack.c.l.b16 %v265
    %v290 = vunpack.c.l.b16 %v266
    %v291 = vunpack.c.l.b16 %v267
    %v292 = vunpack.c.l.b16 %v268
    %v293 = vunpack.c.l.b16 %v269
    %v294 = vpack.c.b16 %v283, %v282
    %v295 = vpack.c.b16 %v285, %v284
    %v296 = vpack.c.b16 %v287, %v286
    %v297 = vpack.c.b16 %v289, %v288
    %v298 = vpack.c.b16 %v291, %v290
    %v299 = vpack.c.b16 %v293, %v292
    %306 = vst [vmem:[#allocation10] sm:$0xff] %v294
    %307 = vst [vmem:[#allocation10 + $0x8] sm:$0xff] %v295
    %308 = vst [vmem:[#allocation10 + $0x10] sm:$0xff] %v296
    %309 = vst [vmem:[#allocation10 + $0x18] sm:$0xff] %v297
    %310 = vst [vmem:[#allocation10 + $0x20] sm:$0xff] %v298
    %311 = vst [vmem:[#allocation10 + $0x28] sm:$0xff] %v299
    // Predicated region
    $region34: #{tpu_custom_call.1} parent=1 // pred_check
      _
    $region35: #{tpu_custom_call.1} parent=1 // pred_check_branch
      %313 = sbr.rel (0) target = $region37
    $region36: #{tpu_custom_call.1} parent=1 // pred_region
      %s315 = ssub.s32 768, 768
      %316 = vsyncadd [#allocation4], %s315
      %s317 = sshll.u32 [#allocation10], 4
      %s318 = int_to_ptr.vmem [resolvable:$true] %s317
      %323 = dma.vmem_to_hbm [thread:$0]  %s318, 768, %s4, [#allocation4], 384, 384, 24
    $region37: #{tpu_custom_call.1} parent=1 // pred_fallthru
      _
    // Predicated region
    $region38: #{tpu_custom_call.1} parent=1 // pred_check
      _
    $region39: #{tpu_custom_call.1} parent=1 // pred_check_branch
      %325 = sbr.rel (0) target = $region41
    $region40: #{tpu_custom_call.1} parent=1 // pred_region
      %326 = dma.done [#allocation4], 768
    $region41: #{tpu_custom_call.1} parent=1 // pred_fallthru
      _
    %327 = vsyncpa [#allocation3], 1
    %328 = vsyncpa [#allocation6], 1
    %329 = vsyncpa [#allocation9], 1
    %330 = vsyncpa [#allocation4], 1

</llo_original>
